<compile_context>
chip_gen: v5e
topology: v5e:2x2
jax: 0.10.0
libtpu: 0.0.40
codegen_flags: <defaults>
</compile_context>

<pallas_src>
import functools

import jax
import jax.numpy as jnp
from jax.experimental import pallas as pl
from jax.experimental.pallas import tpu as pltpu

_EPSILON = 1e-06                 # matches ConvBlock._epsilon
_NEG_PAD = -1.0 / _EPSILON       # pool pad value, -1e6

_VMEM_BLOCK_BUDGET = 32 * 1024 * 1024   # keep pipelined blocks under this
_VMEM_LIMIT_BYTES = 48 * 1024 * 1024    # < v7x's 64 MiB with headroom; > v5e/v6e scoped defaults


def _round_up(x, m):
    return (x + m - 1) // m * m


@functools.lru_cache(maxsize=None)
def _roll_matches_jnp():
    """pltpu.roll is expected to match jnp.roll; probe once (cheap) so the static
    shift signs used in the kernel are robust to any convention difference."""
    def probe(x_ref, o_ref):
        o_ref[...] = pltpu.roll(x_ref[...], 1, 1)

    with jax.ensure_compile_time_eval():
        x = jax.lax.broadcasted_iota(jnp.float32, (8, 128), 1)
        out = pl.pallas_call(
            probe, out_shape=jax.ShapeDtypeStruct((8, 128), jnp.float32))(x)
        return bool(out[0, 0] == 127.0)   # jnp.roll(iota, 1)[..., 0] == 127


def _pick_n_blk(n):
    """Batch several elements per grid step (amortize per-step overhead) while
    keeping >=2 grid steps when possible (v7x megacore sharding of the batch axis)."""
    for cand in (8, 4, 2):
        if n % cand == 0 and n // cand >= 2:
            return cand
    return 1


def _vmem_block_bytes(n_blk, c_in_p, c_out_p, k, l_work, l_half):
    in_blk = n_blk * c_in_p * l_work * 2          # bf16 input block
    out_blk = n_blk * c_out_p * l_half * 4        # f32 output block
    weights = c_out_p * k * c_in_p * 2 + c_out_p * 4
    work = k * c_in_p * l_work * 2 + 3 * c_out_p * l_work * 4   # im2col rhs + acc/y/m
    return 2 * (in_blk + out_blk) + weights + work               # x2: double buffering


def _convblock_kernel(x_ref, w_ref, b_ref, o_ref, *, L, K, n_blk, roll_matches_jnp):
    """Fused Conv1d('same') + bias + ReLU + (-1/eps pad) + MaxPool1d(2).

    x_ref: (n_blk, C_in_pad, L_work)      bf16, zero-padded ('same' left pad baked in)
    w_ref: (C_out_pad, K*C_in_pad)        bf16, tap-major flattened conv weight
    b_ref: (C_out_pad, 1)                 f32 bias
    o_ref: (n_blk, C_out_pad, L_work//2)  f32 pooled output; valid cols are [0, ceil(L/2))
    """
    c_out = o_ref.shape[1]
    l_work = x_ref.shape[2]
    l_half = o_ref.shape[2]

    w = w_ref[...]
    bias = b_ref[...]

    def lane_roll(v, sem_shift):
        # semantic jnp.roll(v, sem_shift, axis=1); XLU rotate, probe-fixed sign.
        amt = (sem_shift if roll_matches_jnp else -sem_shift) % v.shape[1]
        return v if amt == 0 else pltpu.roll(v, amt, 1)

    # Loop-invariant lane mask: conv positions >= L get -1/eps, which
    # (a) reproduces F.pad(..., -1/eps) for the odd-L pooling window and
    # (b) kills the roll wrap-around / zero-padding garbage beyond L.
    lane = jax.lax.broadcasted_iota(jnp.int32, (c_out, l_work), 1)
    in_range = lane < L

    def one_element(i, carry):
        x = x_ref[i]                                      # (C_in_pad, L_work) bf16
        # im2col over the K taps: lane-rolled copies stacked along sublanes so the
        # whole "same" conv becomes ONE MXU matmul with a K*C_in contraction.
        rhs = jnp.concatenate([lane_roll(x, -t) for t in range(K)], axis=0)
        acc = jnp.dot(w, rhs, preferred_element_type=jnp.float32)   # (C_out_pad, L_work) f32
        y = jnp.where(in_range, jnp.maximum(acc + bias, 0.0), _NEG_PAD)
        # MaxPool1d(2): pairwise max via one lane roll (XLU) + VPU max, then a
        # single even-lane compaction (one reshape + unit slice).
        m = jnp.maximum(y, lane_roll(y, -1))
        pooled = m.reshape(c_out, l_half, 2)[:, :, 0]
        o_ref[i] = pooled.astype(o_ref.dtype)
        return carry

    jax.lax.fori_loop(0, n_blk, one_element, 0, unroll=True)


def conv_block(x, w, b):
    """x: (N, C_in, L) f32, w: (C_out, C_in, K), b: (C_out,). Returns (N, C_out, ceil(L/2)) f32."""
    N, C_in, L = x.shape
    C_out, _, K = w.shape
    pad_l = (K - 1) // 2

    c_in_pad = _round_up(C_in, 8)         # sublane-aligned channels
    c_out_pad = _round_up(C_out, 8)
    l_work = _round_up(L + K - 1, 256)    # conv length: lane-dense, pooled length is a 128-multiple
    l_half = l_work // 2
    l_out = (L + 1) // 2
    assert l_work >= L + K - 1 and l_half >= l_out

    # All zero padding done once in the wrapper: channels up to a sublane multiple;
    # length = [pad_l zeros | x | zeros up to l_work] (covers the 'same' right pad).
    x_pad = jnp.pad(x, ((0, 0), (0, c_in_pad - C_in), (pad_l, l_work - L - pad_l)))
    x_pad = x_pad.astype(jnp.bfloat16)    # bf16 operands: MXU-native, half the input DMA bytes

    # Tap-major, channel-padded, flattened weight: W2[co, t*C_in_pad + ci] = w[co, ci, t].
    w_p = jnp.pad(w, ((0, c_out_pad - C_out), (0, c_in_pad - C_in), (0, 0)))
    w2 = jnp.transpose(w_p, (0, 2, 1)).reshape(c_out_pad, K * c_in_pad).astype(jnp.bfloat16)
    b2 = jnp.pad(b, (0, c_out_pad - C_out)).reshape(c_out_pad, 1).astype(jnp.float32)

    n_blk = _pick_n_blk(N)
    while n_blk > 1 and _vmem_block_bytes(n_blk, c_in_pad, c_out_pad, K,
                                          l_work, l_half) > _VMEM_BLOCK_BUDGET:
        n_blk //= 2
    # Note: for extremely long traces an L-tiling grid axis would be added; eqtransformer
    # shapes (L <= ~6k, C <= ~64) stay far below the VMEM budget even at n_blk = 8.

    kernel = functools.partial(
        _convblock_kernel, L=L, K=K, n_blk=n_blk,
        roll_matches_jnp=_roll_matches_jnp())

    flops = 2 * N * c_out_pad * K * c_in_pad * l_work
    bytes_accessed = (N * c_in_pad * l_work * 2 + c_out_pad * K * c_in_pad * 2
                      + c_out_pad * 4 + N * c_out_pad * l_half * 4)

    out = pl.pallas_call(
        kernel,
        out_shape=jax.ShapeDtypeStruct((N, c_out_pad, l_half), jnp.float32),
        grid_spec=pltpu.PrefetchScalarGridSpec(
            num_scalar_prefetch=0,
            grid=(N // n_blk,),
            in_specs=[
                pl.BlockSpec((n_blk, c_in_pad, l_work), lambda n: (n, 0, 0)),
                pl.BlockSpec((c_out_pad, K * c_in_pad), lambda n: (0, 0)),
                pl.BlockSpec((c_out_pad, 1), lambda n: (0, 0)),
            ],
            out_specs=pl.BlockSpec((n_blk, c_out_pad, l_half), lambda n: (n, 0, 0)),
        ),
        compiler_params=pltpu.CompilerParams(
            dimension_semantics=("parallel",),
            vmem_limit_bytes=_VMEM_LIMIT_BYTES),
        cost_estimate=pl.CostEstimate(
            flops=flops, transcendentals=0, bytes_accessed=bytes_accessed),
    )(x_pad, w2, b2)

    # Lane-dense stores inside the kernel; explicit valid-region slice outside.
    return out[:, :C_out, :l_out]


def _reference(x, w, b):
    """Plain-JAX reference of the PyTorch forward, with bf16-rounded operands
    (matching what the kernel feeds the MXU) and f32 accumulation."""
    N, C_in, L = x.shape
    C_out, _, K = w.shape
    pad_l = (K - 1) // 2
    pad_r = K - 1 - pad_l
    xb = x.astype(jnp.bfloat16).astype(jnp.float32)
    wb = w.astype(jnp.bfloat16).astype(jnp.float32)
    x_pad = jnp.pad(xb, ((0, 0), (0, 0), (pad_l, pad_r)))
    y = jnp.zeros((N, C_out, L), jnp.float32)
    for t in range(K):
        y = y + jnp.einsum('oi,nil->nol', wb[:, :, t], x_pad[:, :, t:t + L])
    y = jnp.maximum(y + b[None, :, None], 0.0)
    if L % 2 == 1:
        y = jnp.pad(y, ((0, 0), (0, 0), (0, 1)), constant_values=_NEG_PAD)
    return jnp.max(y.reshape(N, C_out, -1, 2), axis=-1)


if __name__ == "__main__":
    # NOTE: the L1 gradient hooks of the original module are training-time backward
    # hooks and have no forward-pass equivalent; the forward semantics are implemented.
    key = jax.random.PRNGKey(0)
    # (N, C_in, C_out, L, K): odd L exercises the -1/eps pool-pad path;
    # C_in=3 / C_out=6 exercise channel padding; N=4 exercises n_blk > 1.
    configs = [(2, 4, 8, 15, 3), (4, 3, 6, 32, 5)]
    for idx, (N, C_in, C_out, L, K) in enumerate(configs):
        kx, kw, kb = jax.random.split(jax.random.fold_in(key, idx), 3)
        bound = 1.0 / (C_in * K) ** 0.5   # PyTorch Conv1d-style uniform init bound
        x = jax.random.normal(kx, (N, C_in, L), dtype=jnp.float32)
        w = jax.random.uniform(kw, (C_out, C_in, K), jnp.float32, -bound, bound)
        b = jax.random.uniform(kb, (C_out,), jnp.float32, -bound, bound)

        out = jax.block_until_ready(conv_block(x, w, b))
        ref = _reference(x, w, b)
        assert out.shape == (N, C_out, (L + 1) // 2), out.shape
        err = float(jnp.max(jnp.abs(out - ref)))
        assert jnp.allclose(out, ref, atol=1e-3, rtol=1e-3), (
            f"mismatch vs reference (max abs err {err})")

    print("KERNEL_OK")
</pallas_src>

<mosaic_0001>
module attributes {stable_mosaic.version = 11 : i64} {
  func.func @probe(%arg0: memref<8x128xf32, #tpu.memory_space<vmem>>, %arg1: memref<8x128xf32, #tpu.memory_space<vmem>>) attributes {dimension_semantics = [], scalar_prefetch = 0 : i64, scratch_operands = 0 : i64, tpu.core_type = #tpu.core_type<tc>} {
    %c0 = arith.constant 0 : index
    %c0_0 = arith.constant 0 : index
    %0 = vector.load %arg0[%c0, %c0_0] : memref<8x128xf32, #tpu.memory_space<vmem>>, vector<8x128xf32>
    %c1_i32 = arith.constant 1 : i32
    %1 = tpu.dynamic_rotate %0 by %c1_i32 dim 1 : vector<8x128xf32>, i32 -> vector<8x128xf32>
    %c0_1 = arith.constant 0 : index
    %c0_2 = arith.constant 0 : index
    %2 = vector.load %arg1[%c0_1, %c0_2] : memref<8x128xf32, #tpu.memory_space<vmem>>, vector<8x128xf32>
    tpu.vector_store %arg1[%c0_1, %c0_2], %1 {strides = array<i32>} : memref<8x128xf32, #tpu.memory_space<vmem>>, vector<8x128xf32>,
    return
  }
}

</mosaic_0001>

<llo_original>
// kernel: tpu_custom_call.1
$region0: #{tpu_custom_call.1}
  #allocation0 [shape = 'u32[]', space=smem, size = 0x4, offset = 0x4, fixed_abs, tag = 'smem constant byte address 0x4 - core index']
  #allocation1 [shape = 'u32[72,128]{1,0:T(1,128)}', space=vmem, size = 0x9000, scoped, tag = 'internal scratch']
  %s0 = inlined_call_operand.hbm [shape: f32[8,128], index: 0, kind: input, shape index: {}]
  %s1 = inlined_call_operand.hbm [shape: f32[8,128], index: 1, kind: output, shape index: {}]
  %s2 = sld [smem:[#allocation0]]
  $region18: #{tpu_custom_call.1} parent=0
    _
  %s4 = ssub.s32 1, %s2
  %s5 = scalar_select 0, %s4, %s2
  $region1: #{tpu_custom_call.1} parent=0
    #allocation2 [shape = 'u8[4096]{0}', space=vmem, size = 0x1000, scoped, tag = 'input window, operand 0, single buffered']
    #allocation3 [shape = 's32[1]{0}', space=sflag, size = 0x4, scoped, tag = 'scoped memory for tpu_custom_call.1']
    #allocation4 [shape = 's32[1]{0}', space=sflag, size = 0x4, scoped, tag = 'scoped memory for tpu_custom_call.1']
    #allocation5 [shape = 'u8[4096]{0}', space=vmem, size = 0x1000, scoped, tag = 'output window, operand 0, single buffered']
    %6 = vsyncpa [#allocation3], 0
    %7 = vsyncpa [#allocation4], 0
    // Predicated region
    $region2: #{tpu_custom_call.1} parent=1 // pred_check
      _
    $region3: #{tpu_custom_call.1} parent=1 // pred_check_branch
      %9 = sbr.rel (0) target = $region5
    $region4: #{tpu_custom_call.1} parent=1 // pred_region
      %11 = vsyncadd [#allocation3], 0
      %s13 = sshll.u32 %s0, 4
      %s14 = int_to_ptr.hbm [resolvable:$true] %s13
      %s15 = sshll.u32 [#allocation2], 4
      %s16 = int_to_ptr.vmem [resolvable:$true] %s15
      %18 = dma.hbm_to_vmem [thread:$0]  %s14, 128, %s16, [#allocation3]
    $region5: #{tpu_custom_call.1} parent=1 // pred_fallthru
      _
    // Predicated region
    $region6: #{tpu_custom_call.1} parent=1 // pred_check
      _
    $region7: #{tpu_custom_call.1} parent=1 // pred_check_branch
      %20 = sbr.rel (0) target = $region9
    $region8: #{tpu_custom_call.1} parent=1 // pred_region
      %22 = dma.done [#allocation3], 128
    $region9: #{tpu_custom_call.1} parent=1 // pred_fallthru
      _
    %v23 = vld [vmem:[#allocation2] sm:$0xff]
    %24 = vrot.lane.b32.xlu0 %v23, 1
    %v25 = vpop.permute.xlu0 %24
    %26 = vst [vmem:[#allocation5] sm:$0xff] %v25
    // Predicated region
    $region10: #{tpu_custom_call.1} parent=1 // pred_check
      _
    $region11: #{tpu_custom_call.1} parent=1 // pred_check_branch
      %28 = sbr.rel (0) target = $region13
    $region12: #{tpu_custom_call.1} parent=1 // pred_region
      %30 = vsyncadd [#allocation4], 0
      %s32 = sshll.u32 [#allocation5], 4
      %s33 = int_to_ptr.vmem [resolvable:$true] %s32
      %s34 = sshll.u32 %s1, 4
      %s35 = int_to_ptr.hbm [resolvable:$true] %s34
      %37 = dma.vmem_to_hbm [thread:$0]  %s33, 128, %s35, [#allocation4]
    $region13: #{tpu_custom_call.1} parent=1 // pred_fallthru
      _
    // Predicated region
    $region14: #{tpu_custom_call.1} parent=1 // pred_check
      _
    $region15: #{tpu_custom_call.1} parent=1 // pred_check_branch
      %39 = sbr.rel (0) target = $region17
    $region16: #{tpu_custom_call.1} parent=1 // pred_region
      %41 = dma.done [#allocation4], 128
    $region17: #{tpu_custom_call.1} parent=1 // pred_fallthru
      _
    %42 = vsyncpa [#allocation3], 1
    %43 = vsyncpa [#allocation4], 1

</llo_original>
